<compile_context>
chip_gen: v7x
topology: tpu7x:2x2x1
jax: 0.10.0
libtpu: 0.0.40
codegen_flags: <defaults>
</compile_context>

<pallas_src>
import functools

import jax
import jax.numpy as jnp
from jax import lax
from jax.experimental import pallas as pl
from jax.experimental.pallas import tpu as pltpu


# ---------------------------------------------------------------------------
# Kernels
# ---------------------------------------------------------------------------

def _mlp_sigmoid(pooled, w1, w2, tb):
    """pooled: (2*tb, C) f32 [avg rows then max rows]; w1: (hidden, C); w2: (C, hidden)."""
    dn = (((1,), (1,)), ((), ()))  # contract input-channel axis of both operands
    h = lax.dot_general(pooled, w1.astype(jnp.float32), dn,
                        preferred_element_type=jnp.float32)      # (2*tb, hidden)
    h = jnp.maximum(h, 0.0)
    y = lax.dot_general(h, w2.astype(jnp.float32), dn,
                        preferred_element_type=jnp.float32)      # (2*tb, C)
    return jax.nn.sigmoid(y[0:tb, :] + y[tb:2 * tb, :])          # (tb, C)


def _ca_single_step_kernel(x_ref, w1_ref, w2_ref, o_ref, pool_scr):
    # x_ref: (TB, C, HW) -- full spatial extent in one contiguous block.
    tb, c, hw = x_ref.shape
    x = x_ref[...]
    pool_scr[0:tb, :] = jnp.sum(x.astype(jnp.float32), axis=-1) * (1.0 / hw)
    pool_scr[tb:2 * tb, :] = jnp.max(x, axis=-1).astype(jnp.float32)
    res = _mlp_sigmoid(pool_scr[...], w1_ref[...], w2_ref[...], tb)
    o_ref[...] = res.reshape(tb, 1, c).astype(o_ref.dtype)


def _ca_multi_step_kernel(x_ref, w1_ref, w2_ref, o_ref,
                          sum_acc, max_acc, pool_scr, *, hw):
    # x_ref : (TB, C, THW) with THW % 128 == 0
    # sum_acc: (TB, C, 128) f32 ; max_acc: (TB, C, 128) x.dtype ; pool: (2TB, C) f32
    s = pl.program_id(1)
    ns = pl.num_programs(1)
    tb, c, thw = x_ref.shape
    n_chunks = thw // 128

    @pl.when(s == 0)
    def _init():
        sum_acc[...] = jnp.zeros_like(sum_acc)
        max_acc[...] = jnp.full_like(max_acc, -jnp.inf)

    def _accumulate(x):
        # Lane-shaped partial accumulation: VPU-only in the steady state.
        xr = x.reshape(tb, c, n_chunks, 128)
        sum_acc[...] += jnp.sum(xr.astype(jnp.float32), axis=2)
        max_acc[...] = jnp.maximum(max_acc[...], jnp.max(xr, axis=2))

    ragged = (hw % thw) != 0  # static Python bool

    if ragged:
        @pl.when(s != ns - 1)
        def _full_tiles():
            _accumulate(x_ref[...])

        @pl.when(s == ns - 1)
        def _last_tile():
            x = x_ref[...]
            lane = lax.broadcasted_iota(jnp.int32, x.shape, 2)
            valid = (s * thw + lane) < hw
            x_sum = jnp.where(valid, x, jnp.zeros_like(x))
            x_max = jnp.where(valid, x, jnp.full_like(x, -jnp.inf))
            xr_s = x_sum.reshape(tb, c, n_chunks, 128)
            xr_m = x_max.reshape(tb, c, n_chunks, 128)
            sum_acc[...] += jnp.sum(xr_s.astype(jnp.float32), axis=2)
            max_acc[...] = jnp.maximum(max_acc[...], jnp.max(xr_m, axis=2))
    else:
        _accumulate(x_ref[...])

    @pl.when(s == ns - 1)
    def _finalize():
        pool_scr[0:tb, :] = jnp.sum(sum_acc[...], axis=-1) * (1.0 / hw)
        pool_scr[tb:2 * tb, :] = jnp.max(max_acc[...], axis=-1).astype(jnp.float32)
        res = _mlp_sigmoid(pool_scr[...], w1_ref[...], w2_ref[...], tb)
        o_ref[...] = res.reshape(tb, 1, c).astype(o_ref.dtype)


# ---------------------------------------------------------------------------
# Wrapper
# ---------------------------------------------------------------------------

def _vmem_budget_bytes():
    """Generation-aware VMEM budget (leave >=16 MiB / 25% headroom)."""
    cap = 64 << 20  # conservative fallback (v7x physical per-TC VMEM)
    try:
        cap = int(pltpu.get_tpu_info().vmem_capacity_bytes)
    except Exception:
        pass
    return cap - max(16 << 20, cap // 4)   # v7x -> ~48 MiB, v5e/v6e -> ~96 MiB


def _divisors_desc(n, cap):
    cap = max(1, min(cap, n))
    return [d for d in range(cap, 0, -1) if n % d == 0]


def channel_attention(x, w1, w2, *, batch_tile=None, spatial_tile=None):
    """x: (B, C, H, W) NCHW; w1: (hidden, C); w2: (C, hidden) -> (B, C, 1, 1)."""
    B, C, H, W = x.shape
    HW = H * W
    hidden = w1.shape[0]
    assert w1.shape == (hidden, C) and w2.shape == (C, hidden)

    x_flat = x.reshape(B, C, HW)
    itemsize = jnp.dtype(x.dtype).itemsize
    # Conservative weight bytes (assume double-buffered in case the
    # single-buffer request is ignored by the installed jax).
    w_bytes = 2 * (w1.size * jnp.dtype(w1.dtype).itemsize
                   + w2.size * jnp.dtype(w2.dtype).itemsize)
    vmem_budget = int(_vmem_budget_bytes())

    def footprint(bt, thw):
        tile = bt * C * thw * itemsize
        f32_tmp = bt * C * thw * 4 if itemsize < 4 else 0   # in-kernel f32 cast temp
        scratch = bt * C * 128 * (4 + itemsize) + 8 * bt * C * 4
        return 2 * tile + f32_tmp + w_bytes + scratch + (4 << 20)

    # ---- batch tile: largest divisor of B that fits, keeping >=2 parallel
    # ---- grid points when B >= 2 (v7x has two TensorCores). ----
    if batch_tile is not None:
        bt = _divisors_desc(B, batch_tile)[0]
    else:
        bt_cap = B if B == 1 else B // 2
        bt = 1
        for cand in _divisors_desc(B, bt_cap):
            if footprint(cand, HW) <= vmem_budget:
                bt = cand
                break

    # ---- spatial tile: full HW (single contiguous DMA, no mask, no
    # ---- accumulators) whenever it fits the generation-aware budget. ----
    if spatial_tile is not None and spatial_tile < HW:
        thw = max(128, (min(spatial_tile, HW) // 128) * 128)
    elif footprint(bt, HW) <= vmem_budget:
        thw = HW
    else:
        bt = 1
        per_elem = 2 * itemsize + (4 if itemsize < 4 else 0)
        avail = max(C * 128 * per_elem, vmem_budget - w_bytes - (6 << 20))
        thw = max(128, (avail // (C * per_elem) // 128) * 128)

    single_step = thw >= HW

    if single_step:
        thw = HW
        grid = (B // bt,)
        x_spec = pl.BlockSpec((bt, C, HW), lambda b: (b, 0, 0))
        out_spec = pl.BlockSpec((bt, 1, C), lambda b: (b, 0, 0))
        w_idx = lambda b: (0, 0)
        kernel = _ca_single_step_kernel
        scratch = [pltpu.VMEM((2 * bt, C), jnp.float32)]
        dims = ("parallel",)
    else:
        grid = (B // bt, pl.cdiv(HW, thw))
        x_spec = pl.BlockSpec((bt, C, thw), lambda b, s: (b, 0, s))
        out_spec = pl.BlockSpec((bt, 1, C), lambda b, s: (b, 0, 0))
        w_idx = lambda b, s: (0, 0)
        kernel = functools.partial(_ca_multi_step_kernel, hw=HW)
        scratch = [pltpu.VMEM((bt, C, 128), jnp.float32),   # lane-shaped running sum
                   pltpu.VMEM((bt, C, 128), x.dtype),       # lane-shaped running max
                   pltpu.VMEM((2 * bt, C), jnp.float32)]    # stacked avg/max slab
        dims = ("parallel", "arbitrary")

    def run(single_buffer_weights):
        if single_buffer_weights:
            w_specs = [pl.BlockSpec(w1.shape, w_idx, pipeline_mode=pl.Buffered(1)),
                       pl.BlockSpec(w2.shape, w_idx, pipeline_mode=pl.Buffered(1))]
        else:
            w_specs = [pl.BlockSpec(w1.shape, w_idx),
                       pl.BlockSpec(w2.shape, w_idx)]
        return pl.pallas_call(
            kernel,
            out_shape=jax.ShapeDtypeStruct((B, 1, C), x.dtype),
            grid_spec=pltpu.PrefetchScalarGridSpec(
                num_scalar_prefetch=0,
                grid=grid,
                in_specs=[x_spec] + w_specs,
                out_specs=out_spec,
                scratch_shapes=scratch,
            ),
            compiler_params=pltpu.CompilerParams(
                dimension_semantics=dims,
                vmem_limit_bytes=vmem_budget,
            ),
        )(x_flat, w1, w2)

    # Prefer single-buffered weights (constant index_map -> no re-DMA); fall
    # back to default double-buffering if pipeline_mode is unsupported.
    try:
        out = jax.block_until_ready(run(True))
    except Exception:
        out = jax.block_until_ready(run(False))

    return out.reshape(B, C, 1, 1)


# ---------------------------------------------------------------------------
# Reference + self-test
# ---------------------------------------------------------------------------

def channel_attention_ref(x, w1, w2):
    """Pure-JAX reference of the PyTorch forward."""
    avg = jnp.mean(x, axis=(2, 3))                       # (B, C)
    mx = jnp.max(x, axis=(2, 3))                         # (B, C)
    out = (jnp.maximum(avg @ w1.T, 0.0) @ w2.T
           + jnp.maximum(mx @ w1.T, 0.0) @ w2.T)
    return jax.nn.sigmoid(out)[:, :, None, None]


if __name__ == "__main__":
    key = jax.random.PRNGKey(0)
    B, C, hidden = 2, 4, 8  # hidden = `out` arg of ChannelAttention.__init__

    # Exercise all code paths:
    #   1) auto config  -> single-step contiguous-DMA fast path (HW mult. of 128)
    #   2) auto config  -> single-step with HW not a multiple of 128
    #   3) forced spatial_tile=128 -> multi-step, non-ragged (unmasked path)
    #   4) forced spatial_tile=128 -> multi-step, ragged last tile (masked path)
    configs = [
        (16, 16, {}),
        (18, 18, {}),
        (16, 16, dict(spatial_tile=128)),
        (18, 18, dict(spatial_tile=128)),
    ]
    for (H, W, kwargs) in configs:
        k_x, k_w1, k_w2 = jax.random.split(jax.random.fold_in(key, H * 100 + W), 3)
        x = jax.random.normal(k_x, (B, C, H, W), dtype=jnp.float32)

        # Deterministic kaiming-uniform-ish init for the two 1x1 conv weights
        # (Conv2d weight shapes squeezed of their (1,1) spatial dims).
        bound1 = (1.0 / C) ** 0.5
        bound2 = (1.0 / hidden) ** 0.5
        w1 = jax.random.uniform(k_w1, (hidden, C), jnp.float32, -bound1, bound1)
        w2 = jax.random.uniform(k_w2, (C, hidden), jnp.float32, -bound2, bound2)

        out = jax.block_until_ready(channel_attention(x, w1, w2, **kwargs))
        ref = channel_attention_ref(x, w1, w2)
        assert out.shape == (B, C, 1, 1)
        assert jnp.allclose(out, ref, atol=1e-5, rtol=1e-5), (H, W, kwargs)

    print("KERNEL_OK")
</pallas_src>

<mosaic_0001>
module attributes {stable_mosaic.version = 11 : i64} {
  func.func @_ca_single_step_kernel(%arg0: i32, %arg1: memref<1x4x256xf32, #tpu.memory_space<vmem>>, %arg2: memref<8x4xf32, #tpu.memory_space<vmem>>, %arg3: memref<4x8xf32, #tpu.memory_space<vmem>>, %arg4: memref<1x1x4xf32, #tpu.memory_space<vmem>>, %arg5: memref<2x4xf32, #tpu.memory_space<vmem>>) attributes {dimension_semantics = [#tpu.dimension_semantics<parallel>], iteration_bounds = array<i64: 2>, scalar_prefetch = 0 : i64, scratch_operands = 1 : i64, tpu.core_type = #tpu.core_type<tc>, window_params = [{transform_indices = @transform_0, window_bounds = array<i64: 1, 4, 256>}, {pipeline_mode = #tpu.pipeline_mode<synchronous>, transform_indices = @transform_1, window_bounds = array<i64: 8, 4>}, {pipeline_mode = #tpu.pipeline_mode<synchronous>, transform_indices = @transform_2, window_bounds = array<i64: 4, 8>}, {transform_indices = @transform_3, window_bounds = array<i64: 1, 1, 4>}]} {
    %c0 = arith.constant 0 : index
    %c0_0 = arith.constant 0 : index
    %c0_1 = arith.constant 0 : index
    %0 = vector.load %arg1[%c0, %c0_0, %c0_1] : memref<1x4x256xf32, #tpu.memory_space<vmem>>, vector<1x4x256xf32>
    %cst = arith.constant dense<0.000000e+00> : vector<1x4xf32>
    %1 = vector.multi_reduction <add>, %0, %cst [2] : vector<1x4x256xf32> to vector<1x4xf32>
    %cst_2 = arith.constant 3.906250e-03 : f32
    %2 = vector.broadcast %cst_2 : f32 to vector<1x4xf32>
    %3 = arith.mulf %1, %2 : vector<1x4xf32>
    %c0_3 = arith.constant 0 : index
    %c0_4 = arith.constant 0 : index
    %4 = vector.load %arg5[%c0_3, %c0_4] : memref<2x4xf32, #tpu.memory_space<vmem>>, vector<1x4xf32>
    tpu.vector_store %arg5[%c0_3, %c0_4], %3 {strides = array<i32>} : memref<2x4xf32, #tpu.memory_space<vmem>>, vector<1x4xf32>,
    %cst_5 = arith.constant dense<0xFF800000> : vector<1x4xf32>
    %5 = vector.multi_reduction <maximumf>, %0, %cst_5 [2] : vector<1x4x256xf32> to vector<1x4xf32>
    %c1 = arith.constant 1 : index
    %c0_6 = arith.constant 0 : index
    %6 = vector.load %arg5[%c1, %c0_6] : memref<2x4xf32, #tpu.memory_space<vmem>>, vector<1x4xf32>
    tpu.vector_store %arg5[%c1, %c0_6], %5 {strides = array<i32>} : memref<2x4xf32, #tpu.memory_space<vmem>>, vector<1x4xf32>,
    %c0_7 = arith.constant 0 : index
    %c0_8 = arith.constant 0 : index
    %7 = vector.load %arg5[%c0_7, %c0_8] : memref<2x4xf32, #tpu.memory_space<vmem>>, vector<2x4xf32>
    %c0_9 = arith.constant 0 : index
    %c0_10 = arith.constant 0 : index
    %8 = vector.load %arg2[%c0_9, %c0_10] : memref<8x4xf32, #tpu.memory_space<vmem>>, vector<8x4xf32>
    %c0_11 = arith.constant 0 : index
    %c0_12 = arith.constant 0 : index
    %9 = vector.load %arg3[%c0_11, %c0_12] : memref<4x8xf32, #tpu.memory_space<vmem>>, vector<4x8xf32>
    %cst_13 = arith.constant dense<0.000000e+00> : vector<2x8xf32>
    %10 = tpu.matmul %7, %8, %cst_13 {dimension_numbers = #tpu.dot_dimension_numbers<[1], [1], [0], [0], [0, 0, 1, 0], [], []>} : vector<2x4xf32>, vector<8x4xf32>, vector<2x8xf32> -> vector<2x8xf32>
    %cst_14 = arith.constant 0.000000e+00 : f32
    %11 = vector.broadcast %cst_14 : f32 to vector<2x8xf32>
    %12 = arith.maximumf %10, %11 : vector<2x8xf32>
    %cst_15 = arith.constant dense<0.000000e+00> : vector<2x4xf32>
    %13 = tpu.matmul %12, %9, %cst_15 {dimension_numbers = #tpu.dot_dimension_numbers<[1], [1], [0], [0], [0, 0, 1, 0], [], []>} : vector<2x8xf32>, vector<4x8xf32>, vector<2x4xf32> -> vector<2x4xf32>
    %14 = vector.extract_strided_slice %13 {offsets = [0, 0], sizes = [1, 4], strides = [1, 1]} : vector<2x4xf32> to vector<1x4xf32>
    %15 = vector.extract_strided_slice %13 {offsets = [1, 0], sizes = [1, 4], strides = [1, 1]} : vector<2x4xf32> to vector<1x4xf32>
    %16 = arith.addf %14, %15 : vector<1x4xf32>
    %17 = arith.negf %16 : vector<1x4xf32>
    %18 = math.exp %17 : vector<1x4xf32>
    %cst_16 = arith.constant 1.000000e+00 : f32
    %19 = vector.broadcast %cst_16 : f32 to vector<1x4xf32>
    %20 = arith.addf %19, %18 : vector<1x4xf32>
    %21 = arith.divf %19, %20 : vector<1x4xf32>
    %22 = vector.shape_cast %21 : vector<1x4xf32> to vector<1x1x4xf32>
    %c0_17 = arith.constant 0 : index
    %c0_18 = arith.constant 0 : index
    %c0_19 = arith.constant 0 : index
    %23 = vector.load %arg4[%c0_17, %c0_18, %c0_19] : memref<1x1x4xf32, #tpu.memory_space<vmem>>, vector<1x1x4xf32>
    tpu.vector_store %arg4[%c0_17, %c0_18, %c0_19], %22 {strides = array<i32>} : memref<1x1x4xf32, #tpu.memory_space<vmem>>, vector<1x1x4xf32>,
    return
  }
  func.func @transform_0(%arg0: i32) -> (i32, i32, i32) {
    %c0_i32 = arith.constant 0 : i32
    %c0_i32_0 = arith.constant 0 : i32
    %c0_i32_1 = arith.constant 0 : i32
    return %arg0, %c0_i32, %c0_i32_0 : i32, i32, i32
  }
  func.func @transform_1(%arg0: i32) -> (i32, i32) {
    %c0_i32 = arith.constant 0 : i32
    %c0_i32_0 = arith.constant 0 : i32
    %c0_i32_1 = arith.constant 0 : i32
    return %c0_i32, %c0_i32_0 : i32, i32
  }
  func.func @transform_2(%arg0: i32) -> (i32, i32) {
    %c0_i32 = arith.constant 0 : i32
    %c0_i32_0 = arith.constant 0 : i32
    %c0_i32_1 = arith.constant 0 : i32
    return %c0_i32, %c0_i32_0 : i32, i32
  }
  func.func @transform_3(%arg0: i32) -> (i32, i32, i32) {
    %c0_i32 = arith.constant 0 : i32
    %c0_i32_0 = arith.constant 0 : i32
    %c0_i32_1 = arith.constant 0 : i32
    return %arg0, %c0_i32, %c0_i32_0 : i32, i32, i32
  }
}

module attributes {stable_mosaic.version = 11 : i64} {
  func.func @_ca_single_step_kernel(%arg0: i32, %arg1: memref<1x4x256xf32, #tpu.memory_space<vmem>>, %arg2: memref<8x4xf32, #tpu.memory_space<vmem>>, %arg3: memref<4x8xf32, #tpu.memory_space<vmem>>, %arg4: memref<1x1x4xf32, #tpu.memory_space<vmem>>, %arg5: memref<2x4xf32, #tpu.memory_space<vmem>>) attributes {dimension_semantics = [#tpu.dimension_semantics<parallel>], iteration_bounds = array<i64: 2>, scalar_prefetch = 0 : i64, scratch_operands = 1 : i64, tpu.core_type = #tpu.core_type<tc>, window_params = [{transform_indices = @transform_0, window_bounds = array<i64: 1, 4, 256>}, {pipeline_mode = #tpu.pipeline_mode<synchronous>, transform_indices = @transform_1, window_bounds = array<i64: 8, 4>}, {pipeline_mode = #tpu.pipeline_mode<synchronous>, transform_indices = @transform_2, window_bounds = array<i64: 4, 8>}, {transform_indices = @transform_3, window_bounds = array<i64: 1, 1, 4>}]} {
    %c0 = arith.constant 0 : index
    %c0_0 = arith.constant 0 : index
    %c0_1 = arith.constant 0 : index
    %0 = vector.load %arg1[%c0, %c0_0, %c0_1] : memref<1x4x256xf32, #tpu.memory_space<vmem>>, vector<1x4x256xf32>
    %cst = arith.constant dense<0.000000e+00> : vector<1x4xf32>
    %1 = vector.multi_reduction <add>, %0, %cst [2] : vector<1x4x256xf32> to vector<1x4xf32>
    %cst_2 = arith.constant 3.906250e-03 : f32
    %2 = vector.broadcast %cst_2 : f32 to vector<1x4xf32>
    %3 = arith.mulf %1, %2 : vector<1x4xf32>
    %c0_3 = arith.constant 0 : index
    %c0_4 = arith.constant 0 : index
    %4 = vector.load %arg5[%c0_3, %c0_4] : memref<2x4xf32, #tpu.memory_space<vmem>>, vector<1x4xf32>
    tpu.vector_store %arg5[%c0_3, %c0_4], %3 {strides = array<i32>} : memref<2x4xf32, #tpu.memory_space<vmem>>, vector<1x4xf32>,
    %cst_5 = arith.constant dense<0xFF800000> : vector<1x4xf32>
    %5 = vector.multi_reduction <maximumf>, %0, %cst_5 [2] : vector<1x4x256xf32> to vector<1x4xf32>
    %c1 = arith.constant 1 : index
    %c0_6 = arith.constant 0 : index
    %6 = vector.load %arg5[%c1, %c0_6] : memref<2x4xf32, #tpu.memory_space<vmem>>, vector<1x4xf32>
    tpu.vector_store %arg5[%c1, %c0_6], %5 {strides = array<i32>} : memref<2x4xf32, #tpu.memory_space<vmem>>, vector<1x4xf32>,
    %c0_7 = arith.constant 0 : index
    %c0_8 = arith.constant 0 : index
    %7 = vector.load %arg5[%c0_7, %c0_8] : memref<2x4xf32, #tpu.memory_space<vmem>>, vector<2x4xf32>
    %c0_9 = arith.constant 0 : index
    %c0_10 = arith.constant 0 : index
    %8 = vector.load %arg2[%c0_9, %c0_10] : memref<8x4xf32, #tpu.memory_space<vmem>>, vector<8x4xf32>
    %c0_11 = arith.constant 0 : index
    %c0_12 = arith.constant 0 : index
    %9 = vector.load %arg3[%c0_11, %c0_12] : memref<4x8xf32, #tpu.memory_space<vmem>>, vector<4x8xf32>
    %cst_13 = arith.constant dense<0.000000e+00> : vector<2x8xf32>
    %10 = tpu.matmul %7, %8, %cst_13 {dimension_numbers = #tpu.dot_dimension_numbers<[1], [1], [0], [0], [0, 0, 1, 0], [], []>} : vector<2x4xf32>, vector<8x4xf32>, vector<2x8xf32> -> vector<2x8xf32>
    %cst_14 = arith.constant 0.000000e+00 : f32
    %11 = vector.broadcast %cst_14 : f32 to vector<2x8xf32>
    %12 = arith.maximumf %10, %11 : vector<2x8xf32>
    %cst_15 = arith.constant dense<0.000000e+00> : vector<2x4xf32>
    %13 = tpu.matmul %12, %9, %cst_15 {dimension_numbers = #tpu.dot_dimension_numbers<[1], [1], [0], [0], [0, 0, 1, 0], [], []>} : vector<2x8xf32>, vector<4x8xf32>, vector<2x4xf32> -> vector<2x4xf32>
    %14 = vector.extract_strided_slice %13 {offsets = [0, 0], sizes = [1, 4], strides = [1, 1]} : vector<2x4xf32> to vector<1x4xf32>
    %15 = vector.extract_strided_slice %13 {offsets = [1, 0], sizes = [1, 4], strides = [1, 1]} : vector<2x4xf32> to vector<1x4xf32>
    %16 = arith.addf %14, %15 : vector<1x4xf32>
    %17 = arith.negf %16 : vector<1x4xf32>
    %18 = math.exp %17 : vector<1x4xf32>
    %cst_16 = arith.constant 1.000000e+00 : f32
    %19 = vector.broadcast %cst_16 : f32 to vector<1x4xf32>
    %20 = arith.addf %19, %18 : vector<1x4xf32>
    %21 = arith.divf %19, %20 : vector<1x4xf32>
    %22 = vector.shape_cast %21 : vector<1x4xf32> to vector<1x1x4xf32>
    %c0_17 = arith.constant 0 : index
    %c0_18 = arith.constant 0 : index
    %c0_19 = arith.constant 0 : index
    %23 = vector.load %arg4[%c0_17, %c0_18, %c0_19] : memref<1x1x4xf32, #tpu.memory_space<vmem>>, vector<1x1x4xf32>
    tpu.vector_store %arg4[%c0_17, %c0_18, %c0_19], %22 {strides = array<i32>} : memref<1x1x4xf32, #tpu.memory_space<vmem>>, vector<1x1x4xf32>,
    return
  }
  func.func @transform_0(%arg0: i32) -> (i32, i32, i32) {
    %c0_i32 = arith.constant 0 : i32
    %c0_i32_0 = arith.constant 0 : i32
    %c0_i32_1 = arith.constant 0 : i32
    return %arg0, %c0_i32, %c0_i32_0 : i32, i32, i32
  }
  func.func @transform_1(%arg0: i32) -> (i32, i32) {
    %c0_i32 = arith.constant 0 : i32
    %c0_i32_0 = arith.constant 0 : i32
    %c0_i32_1 = arith.constant 0 : i32
    return %c0_i32, %c0_i32_0 : i32, i32
  }
  func.func @transform_2(%arg0: i32) -> (i32, i32) {
    %c0_i32 = arith.constant 0 : i32
    %c0_i32_0 = arith.constant 0 : i32
    %c0_i32_1 = arith.constant 0 : i32
    return %c0_i32, %c0_i32_0 : i32, i32
  }
  func.func @transform_3(%arg0: i32) -> (i32, i32, i32) {
    %c0_i32 = arith.constant 0 : i32
    %c0_i32_0 = arith.constant 0 : i32
    %c0_i32_1 = arith.constant 0 : i32
    return %arg0, %c0_i32, %c0_i32_0 : i32, i32, i32
  }
}

</mosaic_0001>

<llo_original>
// kernel: tpu_custom_call.1
$region0: #{tpu_custom_call.1}
  #allocation0 [shape = 'u32[]', space=smem, size = 0x4, offset = 0x4, fixed_abs, tag = 'smem constant byte address 0x4 - core index']
  #allocation1 [shape = 'u32[144,128]{1,0:T(1,128)}', space=vmem, size = 0x12000, scoped, tag = 'internal scratch']
  #allocation2 [shape = 'f32[2,4]{1,0:T(2,128)}', space=vmem, size = 0x400, scoped, tag = 'scratch operand']
  %s0 = inlined_call_operand.hbm [shape: f32[2,4,256], index: 0, kind: input, shape index: {}]
  %s1 = inlined_call_operand.vmem [shape: f32[8,4], index: 1, kind: input, shape index: {}]
  %s2 = inlined_call_operand.vmem [shape: f32[4,8], index: 2, kind: input, shape index: {}]
  %s3 = inlined_call_operand.hbm [shape: f32[2,1,4], index: 3, kind: output, shape index: {}]
  %s4 = sld [smem:[#allocation0]]
  $region49: #{tpu_custom_call.1} parent=0
    _
  %s6 = ssub.s32 1, %s4
  %s7 = scalar_select 0, %s6, %s4
  $region1: #{tpu_custom_call.1} parent=0
    #allocation3 [shape = 'u8[8192]{0}', space=vmem, size = 0x2000, scoped, tag = 'input window, operand 0']
    #allocation4 [shape = 's32[2]{0}', space=sflag, size = 0x8, scoped, tag = 'scoped memory for tpu_custom_call.1']
    #allocation5 [shape = 's32[2]{0}', space=sflag, size = 0x8, scoped, tag = 'scoped memory for tpu_custom_call.1']
    #allocation6 [shape = 'u8[1024]{0}', space=vmem, size = 0x400, scoped, tag = 'output window, operand 0']
    %8 = vsyncpa [#allocation4], 0
    %s9 = scalar_lea.sflag [#allocation4], 1
    %10 = vsyncpa %s9, 0
    %11 = vsyncpa [#allocation5], 0
    %s12 = scalar_lea.sflag [#allocation5], 1
    %13 = vsyncpa %s12, 0
    loop: start=0, step=1, limit=4
    $region2: #{tpu_custom_call.1} parent=1 // loop_pre_header
      _
    $region3: #{tpu_custom_call.1} parent=1 // loop_header
      %s15 = sphi 0, %s19
      %p16 = scmp.ge.s32.totalorder %s15, 4
      %s25 = sphi 0, %s27
      %s28 = sphi 0, %s25
      %s29 = sphi 0, %s28
      %s45 = sphi 0, %s29
      %s49 = sphi 0, %s49
      %s51 = sphi 0, %s49
      %s52 = sphi 0, %s51
      %s66 = sphi 0, %s52
      %s70 = sphi 0, %s70
      %s72 = sphi 0, %s70
      %s73 = sphi 0, %s72
      %s87 = sphi 0, %s73
      %s93 = sphi 0, %s95
      %s96 = sphi 0, %s93
      %s97 = sphi 0, %s96
      %s113 = sphi 0, %s97
    $region4: #{tpu_custom_call.1} parent=1 // loop_header_branch
      %18 = sbr.rel (%p16) target = $region8
    $region5: #{tpu_custom_call.1} parent=1 // loop_body
      %s20 = ssub.s32 %s15, 1
      %s21 = ssub.s32 %s15, 2
      %s22 = sadd.s32 %s15, 1
      %s23 = ssub.s32 %s15, %s22
      %p24 = scmp.eq.s32.totalorder %s23, 0
      %s26 = sadd.s32 %s25, 1
      %s27 = scalar_select %p24, %s25, %s26
      %p30 = pneg %p24
      %p31 = scmp.eq.s32.totalorder %s15, 1
      %p32 = por %p30, %p31
      %p33 = scmp.ne.s32.totalorder %s25, %s28
      %p34 = scmp.eq.s32.totalorder %s15, 0
      %p35 = por %p33, %p34
      %p36 = scmp.ne.s32.totalorder %s25, %s28
      %p37 = scmp.eq.s32.totalorder %s20, 1
      %p38 = por %p36, %p37
      %p39 = scmp.ne.s32.totalorder %s28, %s29
      %p40 = scmp.eq.s32.totalorder %s20, 0
      %p41 = por %p39, %p40
      %p42 = scmp.ne.s32.totalorder %s28, %s29
      %p43 = scmp.eq.s32.totalorder %s21, 1
      %p44 = por %p42, %p43
      %p46 = scmp.ne.s32.totalorder %s29, %s45
      %p47 = scmp.eq.s32.totalorder %s21, 0
      %p48 = por %p46, %p47
      %s50 = sadd.s32 %s49, 1
      %p53 = scmp.eq.s32.totalorder %s15, 1
      %p54 = scmp.ne.s32.totalorder %s49, %s51
      %p55 = scmp.eq.s32.totalorder %s15, 0
      %p56 = por %p54, %p55
      %p57 = scmp.ne.s32.totalorder %s49, %s51
      %p58 = scmp.eq.s32.totalorder %s20, 1
      %p59 = por %p57, %p58
      %p60 = scmp.ne.s32.totalorder %s51, %s52
      %p61 = scmp.eq.s32.totalorder %s20, 0
      %p62 = por %p60, %p61
      %p63 = scmp.ne.s32.totalorder %s51, %s52
      %p64 = scmp.eq.s32.totalorder %s21, 1
      %p65 = por %p63, %p64
      %p67 = scmp.ne.s32.totalorder %s52, %s66
      %p68 = scmp.eq.s32.totalorder %s21, 0
      %p69 = por %p67, %p68
      %s71 = sadd.s32 %s70, 1
      %p74 = scmp.eq.s32.totalorder %s15, 1
      %p75 = scmp.ne.s32.totalorder %s70, %s72
      %p76 = scmp.eq.s32.totalorder %s15, 0
      %p77 = por %p75, %p76
      %p78 = scmp.ne.s32.totalorder %s70, %s72
      %p79 = scmp.eq.s32.totalorder %s20, 1
      %p80 = por %p78, %p79
      %p81 = scmp.ne.s32.totalorder %s72, %s73
      %p82 = scmp.eq.s32.totalorder %s20, 0
      %p83 = por %p81, %p82
      %p84 = scmp.ne.s32.totalorder %s72, %s73
      %p85 = scmp.eq.s32.totalorder %s21, 1
      %p86 = por %p84, %p85
      %p88 = scmp.ne.s32.totalorder %s73, %s87
      %p89 = scmp.eq.s32.totalorder %s21, 0
      %p90 = por %p88, %p89
      %s91 = ssub.s32 %s15, %s22
      %p92 = scmp.eq.s32.totalorder %s91, 0
      %s94 = sadd.s32 %s93, 1
      %s95 = scalar_select %p92, %s93, %s94
      %p98 = pneg %p92
      %p99 = scmp.eq.s32.totalorder %s15, 1
      %p100 = por %p98, %p99
      %p101 = scmp.ne.s32.totalorder %s93, %s96
      %p102 = scmp.eq.s32.totalorder %s15, 0
      %p103 = por %p101, %p102
      %p104 = scmp.ne.s32.totalorder %s93, %s96
      %p105 = scmp.eq.s32.totalorder %s20, 1
      %p106 = por %p104, %p105
      %p107 = scmp.ne.s32.totalorder %s96, %s97
      %p108 = scmp.eq.s32.totalorder %s20, 0
      %p109 = por %p107, %p108
      %p110 = scmp.ne.s32.totalorder %s96, %s97
      %p111 = scmp.eq.s32.totalorder %s21, 1
      %p112 = por %p110, %p111
      %p114 = scmp.ne.s32.totalorder %s97, %s113
      %p115 = scmp.eq.s32.totalorder %s21, 0
      %p116 = por %p114, %p115
      %p117 = scmp.le.s32.totalorder 1, %s15
      %p118 = scmp.lt.s32.totalorder %s15, 3
      %p119 = pnand %p117, %p118
      %p120 = pneg %p119
      // Predicated region
      $region9: #{tpu_custom_call.1} parent=5 // pred_check
        _
      $region10: #{tpu_custom_call.1} parent=5 // pred_check_branch
        %122 = sbr.rel (%p119) target = $region12
      $region11: #{tpu_custom_call.1} parent=5 // pred_region
        %s123 = ssub.s32 %s15, 1
        // Predicated region
        $region13: #{tpu_custom_call.1} parent=11 // pred_check
          %p124 = pneg %p62
        $region14: #{tpu_custom_call.1} parent=11 // pred_check_branch
          %126 = sbr.rel (%p124) target = $region16
        $region15: #{tpu_custom_call.1} parent=11 // pred_region
          _
        $region16: #{tpu_custom_call.1} parent=11 // pred_fallthru
          _
        // Predicated region
        $region17: #{tpu_custom_call.1} parent=11 // pred_check
          %p127 = pneg %p83
        $region18: #{tpu_custom_call.1} parent=11 // pred_check_branch
          %129 = sbr.rel (%p127) target = $region20
        $region19: #{tpu_custom_call.1} parent=11 // pred_region
          _
        $region20: #{tpu_custom_call.1} parent=11 // pred_fallthru
          _
      $region12: #{tpu_custom_call.1} parent=5 // pred_fallthru
        _
      %p130 = scmp.lt.s32.totalorder %s15, 2
      // Predicated region
      $region21: #{tpu_custom_call.1} parent=5 // pred_check
        %p131 = pneg %p130
      $region22: #{tpu_custom_call.1} parent=5 // pred_check_branch
        %133 = sbr.rel (%p131) target = $region24
      $region23: #{tpu_custom_call.1} parent=5 // pred_region
        // Predicated region
        $region25: #{tpu_custom_call.1} parent=23 // pred_check
          %p134 = pneg %p35
        $region26: #{tpu_custom_call.1} parent=23 // pred_check_branch
          %136 = sbr.rel (%p134) target = $region28
        $region27: #{tpu_custom_call.1} parent=23 // pred_region
          %s137 = sand.u32 %s25, 1
          %s138 = scalar_lea.sflag [#allocation4], %s137
          %s139 = sand.u32 %s25, 1
          %s140 = smul.addr %s139, 8
          %s141 = scalar_lea.vmem [#allocation3], %s140
          %s143 = ssub.s32 128, 128
          %144 = vsyncadd %s138, %s143
          %s145 = smul.addr %s15, 2
          %s146 = smul.addr %s145, 64
          %s147 = scalar_lea.hbm %s0, %s146
          %s149 = sshll.u32 %s141, 4
          %s150 = int_to_ptr.vmem [resolvable:$true] %s149
          %152 = dma.hbm_to_vmem [thread:$0]  %s147, 128, %s150, %s138
        $region28: #{tpu_custom_call.1} parent=23 // pred_fallthru
          _
      $region24: #{tpu_custom_call.1} parent=5 // pred_fallthru
        _
      %p153 = scmp.le.s32.totalorder 1, %s15
      %p154 = scmp.lt.s32.totalorder %s15, 3
      %p155 = pnand %p153, %p154
      %p156 = pneg %p155
      // Predicated region
      $region29: #{tpu_custom_call.1} parent=5 // pred_check
        _
      $region30: #{tpu_custom_call.1} parent=5 // pred_check_branch
        %158 = sbr.rel (%p155) target = $region32
      $region31: #{tpu_custom_call.1} parent=5 // pred_region
        %s159 = ssub.s32 %s15, 1
        %s160 = sand.u32 %s28, 1
        %s161 = scalar_lea.sflag [#allocation4], %s160
        %s162 = sand.u32 %s28, 1
        %s163 = smul.addr %s162, 8
        %s164 = scalar_lea.vmem [#allocation3], %s163
        // Predicated region
        $region33: #{tpu_custom_call.1} parent=31 // pred_check
          %p165 = pneg %p41
        $region34: #{tpu_custom_call.1} parent=31 // pred_check_branch
          %167 = sbr.rel (%p165) target = $region36
        $region35: #{tpu_custom_call.1} parent=31 // pred_region
          %168 = dma.done %s161, 128
        $region36: #{tpu_custom_call.1} parent=31 // pred_fallthru
          _
        %s169 = sand.u32 %s28, 1
        %s170 = scalar_lea.sflag [#allocation4], %s169
        %s171 = sand.u32 %s28, 1
        %s172 = smul.addr %s171, 8
        %s173 = scalar_lea.vmem [#allocation3], %s172
        %p174 = pneg %p41
        %p175 = pneg %p38
        %p176 = pneg %p62
        %p177 = pneg %p59
        %p178 = pneg %p83
        %p179 = pneg %p80
        %p180 = pneg %p109
        %p181 = pneg %p106
        %s182 = sand.u32 %s96, 1
        %s183 = scalar_lea.sflag [#allocation5], %s182
        %s184 = sand.u32 %s96, 1
        %s185 = scalar_lea.vmem [#allocation6], %s184
        %v186 = vld [vmem:[%s164] sm:$0xff]
        %v188 = vcombine.high %v186, %v186
        %vm190 = vcmask 1043456
        %v191 = vsel %vm190, %v186, 0.0
        %v192 = vsel %vm190, %v188, 0.0
        %v193 = vadd.f32 %v191, %v192
        %194 = vadd.xlane.f32.xlu0 %v193
        %v195 = vpop.xlane.xlu0 %194
        %v196 = vmul.f32 %v195, 0.00390625
        %v198 = vlaneseq
        %v199 = vand.u32 %v198, 127
        %v200 = vlaneseq
        %v201 = vshrl.u32 %v200, 7
        %v202 = vsub.s32 %v199, %v201
        %v203 = vrot.slane %v196, %v202
        %vm205 = vcmask 24576
        %206 = vst.msk [vmem:[#allocation2] sm:$0x1] %vm205, %v203
        %v207 = vsel %vm190, %v186, -inf
        %v208 = vsel %vm190, %v188, -inf
        %v209 = vmax.f32 %v207, %v208
        %210 = vmax.xlane.f32.xlu0 %v209
        %v211 = vpop.xlane.xlu0 %210
        %v213 = vlaneseq
        %v214 = vshrl.u32 %v213, 7
        %v215 = vsub.s32 %v199, %v214
        %v216 = vrot.slane %v211, %v215
        %218 = vst.msk [vmem:[#allocation2 + $0x1] sm:$0x1] %vm205, %v216
        %v219 = vld [vmem:[#allocation2] sm:$0x3]
        %v220 = vld [vmem:[%s1] sm:$0xff]
        %v221 = vld [vmem:[%s2] sm:$0xf]
        %vm222 = vcmask 31744
        %v224 = vsel %vm222, %v219, 0
        %v227 = vsel %vm222, %v220, 0
        %229 = vmatprep.subr.mxu0 0.0
        %230 = vmatpush1.xpose.msra.mxu0 %v227
        %231 = vmatprep.subr.mxu0 0.0
        %232 = vmatpush1.xpose.msra.mxu0 0.0
        %233 = vmatprep.subr.mxu0 0.0
        %234 = vmatpush1.xpose.msra.mxu0 0.0
        %235 = vmatprep.subr.mxu0 0.0
        %236 = vmatpush1.xpose.msra.mxu0 0.0
        %237 = vmatprep.subr.mxu0 0.0
        %238 = vmatpush1.xpose.msra.mxu0 0.0
        %239 = vmatprep.subr.mxu0 0.0
        %240 = vmatpush1.xpose.msra.mxu0 0.0
        %241 = vmatprep.subr.mxu0 0.0
        %242 = vmatpush1.xpose.msra.mxu0 0.0
        %243 = vmatprep.subr.mxu0 0.0
        %244 = vmatpush1.xpose.msra.mxu0 0.0
        %245 = vmatprep.subr.mxu0 0.0
        %246 = vmatpush1.xpose.msra.mxu0 0.0
        %247 = vmatprep.subr.mxu0 0.0
        %248 = vmatpush1.xpose.msra.mxu0 0.0
        %249 = vmatprep.subr.mxu0 0.0
        %250 = vmatpush1.xpose.msra.mxu0 0.0
        %251 = vmatprep.subr.mxu0 0.0
        %252 = vmatpush1.xpose.msra.mxu0 0.0
        %253 = vmatprep.subr.mxu0 0.0
        %254 = vmatpush1.xpose.msra.mxu0 0.0
        %255 = vmatprep.subr.mxu0 0.0
        %256 = vmatpush1.xpose.msra.mxu0 0.0
        %257 = vmatprep.subr.mxu0 0.0
        %258 = vmatpush1.xpose.msra.mxu0 0.0
        %259 = vmatprep.subr.mxu0 0.0
        %260 = vmatpush1.xpose.msra.mxu0 0.0
        %261 = vmatprep.subr.mxu0 0.0
        %262 = vmatpush1.xpose.msra.mxu0 0.0
        %263 = vmatprep.subr.mxu0 0.0
        %264 = vmatpush1.xpose.msra.mxu0 0.0
        %265 = vmatprep.subr.mxu0 0.0
        %266 = vmatpush1.xpose.msra.mxu0 0.0
        %267 = vmatprep.subr.mxu0 0.0
        %268 = vmatpush1.xpose.msra.mxu0 0.0
        %269 = vmatprep.subr.mxu0 0.0
        %270 = vmatpush1.xpose.msra.mxu0 0.0
        %271 = vmatprep.subr.mxu0 0.0
        %272 = vmatpush1.xpose.msra.mxu0 0.0
        %273 = vmatprep.subr.mxu0 0.0
        %274 = vmatpush1.xpose.msra.mxu0 0.0
        %275 = vmatprep.subr.mxu0 0.0
        %276 = vmatpush1.xpose.msra.mxu0 0.0
        %277 = vmatprep.subr.mxu0 0.0
        %278 = vmatpush1.xpose.msra.mxu0 0.0
        %279 = vmatprep.subr.mxu0 0.0
        %280 = vmatpush1.xpose.msra.mxu0 0.0
        %281 = vmatprep.subr.mxu0 0.0
        %282 = vmatpush1.xpose.msra.mxu0 0.0
        %283 = vmatprep.subr.mxu0 0.0
        %284 = vmatpush1.xpose.msra.mxu0 0.0
        %285 = vmatprep.subr.mxu0 0.0
        %286 = vmatpush1.xpose.msra.mxu0 0.0
        %287 = vmatprep.subr.mxu0 0.0
        %288 = vmatpush1.xpose.msra.mxu0 0.0
        %289 = vmatprep.subr.mxu0 0.0
        %290 = vmatpush1.xpose.msra.mxu0 0.0
        %291 = vmatprep.subr.mxu0 0.0
        %292 = vmatpush1.xpose.msra.mxu0 0.0
        %293 = vmatprep.mubr.f32.mxu0 0.0
        %294 = vmatmul.mubr.f32.gmra.mrb[0].mxu0 %v224
        %v295 = vpop.f32.mrb[0].mxu0
        %v296 = vadd.f32 0.0, %v295
        %v297 = vpop.f32.mrb[0].mxu0
        %298 = vdwg.mxu0
        %v299 = vmax.f32 %v296, 0.0
        %vm300 = vcmask 64512
        %v302 = vsel %vm300, %v299, 0
        %v305 = vsel %vm300, %v221, 0
        %307 = vmatprep.subr.mxu0 0.0
        %308 = vmatpush1.xpose.msra.mxu0 %v305
        %309 = vmatprep.subr.mxu0 0.0
        %310 = vmatpush1.xpose.msra.mxu0 0.0
        %311 = vmatprep.subr.mxu0 0.0
        %312 = vmatpush1.xpose.msra.mxu0 0.0
        %313 = vmatprep.subr.mxu0 0.0
        %314 = vmatpush1.xpose.msra.mxu0 0.0
        %315 = vmatprep.subr.mxu0 0.0
        %316 = vmatpush1.xpose.msra.mxu0 0.0
        %317 = vmatprep.subr.mxu0 0.0
        %318 = vmatpush1.xpose.msra.mxu0 0.0
        %319 = vmatprep.subr.mxu0 0.0
        %320 = vmatpush1.xpose.msra.mxu0 0.0
        %321 = vmatprep.subr.mxu0 0.0
        %322 = vmatpush1.xpose.msra.mxu0 0.0
        %323 = vmatprep.subr.mxu0 0.0
        %324 = vmatpush1.xpose.msra.mxu0 0.0
        %325 = vmatprep.subr.mxu0 0.0
        %326 = vmatpush1.xpose.msra.mxu0 0.0
        %327 = vmatprep.subr.mxu0 0.0
        %328 = vmatpush1.xpose.msra.mxu0 0.0
        %329 = vmatprep.subr.mxu0 0.0
        %330 = vmatpush1.xpose.msra.mxu0 0.0
        %331 = vmatprep.subr.mxu0 0.0
        %332 = vmatpush1.xpose.msra.mxu0 0.0
        %333 = vmatprep.subr.mxu0 0.0
        %334 = vmatpush1.xpose.msra.mxu0 0.0
        %335 = vmatprep.subr.mxu0 0.0
        %336 = vmatpush1.xpose.msra.mxu0 0.0
        %337 = vmatprep.subr.mxu0 0.0
        %338 = vmatpush1.xpose.msra.mxu0 0.0
        %339 = vmatprep.subr.mxu0 0.0
        %340 = vmatpush1.xpose.msra.mxu0 0.0
        %341 = vmatprep.subr.mxu0 0.0
        %342 = vmatpush1.xpose.msra.mxu0 0.0
        %343 = vmatprep.subr.mxu0 0.0
        %344 = vmatpush1.xpose.msra.mxu0 0.0
        %345 = vmatprep.subr.mxu0 0.0
        %346 = vmatpush1.xpose.msra.mxu0 0.0
        %347 = vmatprep.subr.mxu0 0.0
        %348 = vmatpush1.xpose.msra.mxu0 0.0
        %349 = vmatprep.subr.mxu0 0.0
        %350 = vmatpush1.xpose.msra.mxu0 0.0
        %351 = vmatprep.subr.mxu0 0.0
        %352 = vmatpush1.xpose.msra.mxu0 0.0
        %353 = vmatprep.subr.mxu0 0.0
        %354 = vmatpush1.xpose.msra.mxu0 0.0
        %355 = vmatprep.subr.mxu0 0.0
        %356 = vmatpush1.xpose.msra.mxu0 0.0
        %357 = vmatprep.subr.mxu0 0.0
        %358 = vmatpush1.xpose.msra.mxu0 0.0
        %359 = vmatprep.subr.mxu0 0.0
        %360 = vmatpush1.xpose.msra.mxu0 0.0
        %361 = vmatprep.subr.mxu0 0.0
        %362 = vmatpush1.xpose.msra.mxu0 0.0
        %363 = vmatprep.subr.mxu0 0.0
        %364 = vmatpush1.xpose.msra.mxu0 0.0
        %365 = vmatprep.subr.mxu0 0.0
        %366 = vmatpush1.xpose.msra.mxu0 0.0
        %367 = vmatprep.subr.mxu0 0.0
        %368 = vmatpush1.xpose.msra.mxu0 0.0
        %369 = vmatprep.subr.mxu0 0.0
        %370 = vmatpush1.xpose.msra.mxu0 0.0
        %371 = vmatprep.mubr.f32.mxu0 0.0
        %372 = vmatmul.mubr.f32.gmra.mrb[0].mxu0 %v302
        %v373 = vpop.f32.mrb[0].mxu0
        %v374 = vadd.f32 0.0, %v373
        %v375 = vpop.f32.mrb[0].mxu0
        %376 = vdwg.mxu0
        %v378 = vrot.slane %v374, 1
        %v380 = vadd.f32 %v374, %v378
        %v381 = vxor.u32 %v380, 2147483648
        %v382 = vmul.f32 %v381, 1.442695
        %v383 = vpow.pop %v382
        %v384 = vadd.f32 %v383, 1.0
        %v385 = vrcp.pop %v384
        %v386 = vmul.f32 1.0, %v385
        %387 = vst.msk [vmem:[%s185] sm:$0x1] %vm205, %v386
        %s388 = sand.u32 %s96, 1
        %s389 = scalar_lea.sflag [#allocation5], %s388
        %s390 = sand.u32 %s96, 1
        %s391 = scalar_lea.vmem [#allocation6], %s390
        // Predicated region
        $region37: #{tpu_custom_call.1} parent=31 // pred_check
          %p392 = pneg %p106
        $region38: #{tpu_custom_call.1} parent=31 // pred_check_branch
          %394 = sbr.rel (%p392) target = $region40
        $region39: #{tpu_custom_call.1} parent=31 // pred_region
          %s396 = ssub.s32 16, 16
          %397 = vsyncadd %s389, %s396
          %s398 = smul.addr %s20, 16
          %s399 = scalar_lea.hbm %s3, %s398
          %s401 = sshll.u32 %s391, 4
          %s402 = int_to_ptr.vmem [resolvable:$true] %s401
          %404 = dma.vmem_to_hbm [thread:$0]  %s402, 16, %s399, %s389
        $region40: #{tpu_custom_call.1} parent=31 // pred_fallthru
          _
      $region32: #{tpu_custom_call.1} parent=5 // pred_fallthru
        _
      %p405 = scmp.le.s32.totalorder 2, %s15
      // Predicated region
      $region41: #{tpu_custom_call.1} parent=5 // pred_check
        %p406 = pneg %p405
      $region42: #{tpu_custom_call.1} parent=5 // pred_check_branch
        %408 = sbr.rel (%p406) target = $region44
      $region43: #{tpu_custom_call.1} parent=5 // pred_region
        %s409 = ssub.s32 %s15, 2
        // Predicated region
        $region45: #{tpu_custom_call.1} parent=43 // pred_check
          %p410 = pneg %p112
        $region46: #{tpu_custom_call.1} parent=43 // pred_check_branch
          %412 = sbr.rel (%p410) target = $region48
        $region47: #{tpu_custom_call.1} parent=43 // pred_region
          %s413 = sand.u32 %s97, 1
          %s414 = scalar_lea.sflag [#allocation5], %s413
          %s415 = sand.u32 %s97, 1
          %s416 = scalar_lea.vmem [#allocation6], %s415
          %417 = dma.done %s414, 16
        $region48: #{tpu_custom_call.1} parent=43 // pred_fallthru
          _
      $region44: #{tpu_custom_call.1} parent=5 // pred_fallthru
        _
    $region6: #{tpu_custom_call.1} parent=1 // loop_footer
      %s19 = sadd.s32 1, %s15
    $region7: #{tpu_custom_call.1} parent=1 // loop_footer_branch
      %14 = sbr.rel target = $region3
    $region8: #{tpu_custom_call.1} parent=1 // loop_exit
      _
    %418 = vsyncpa [#allocation4], 1
    %s419 = scalar_lea.sflag [#allocation4], 1
    %420 = vsyncpa %s419, 1
    %421 = vsyncpa [#allocation5], 1
    %s422 = scalar_lea.sflag [#allocation5], 1
    %423 = vsyncpa %s422, 1

// kernel: tpu_custom_call.1
$region0: #{tpu_custom_call.1}
  #allocation0 [shape = 'u32[]', space=smem, size = 0x4, offset = 0x4, fixed_abs, tag = 'smem constant byte address 0x4 - core index']
  #allocation1 [shape = 'u32[144,128]{1,0:T(1,128)}', space=vmem, size = 0x12000, scoped, tag = 'internal scratch']
  #allocation2 [shape = 'f32[2,4]{1,0:T(2,128)}', space=vmem, size = 0x400, scoped, tag = 'scratch operand']
  %s0 = inlined_call_operand.hbm [shape: f32[2,4,256], index: 0, kind: input, shape index: {}]
  %s1 = inlined_call_operand.vmem [shape: f32[8,4], index: 1, kind: input, shape index: {}]
  %s2 = inlined_call_operand.vmem [shape: f32[4,8], index: 2, kind: input, shape index: {}]
  %s3 = inlined_call_operand.hbm [shape: f32[2,1,4], index: 3, kind: output, shape index: {}]
  %s4 = sld [smem:[#allocation0]]
  $region49: #{tpu_custom_call.1} parent=0
    _
  %s6 = ssub.s32 1, %s4
  %s7 = scalar_select 0, %s6, %s4
  $region1: #{tpu_custom_call.1} parent=0
    #allocation3 [shape = 'u8[8192]{0}', space=vmem, size = 0x2000, scoped, tag = 'input window, operand 0']
    #allocation4 [shape = 's32[2]{0}', space=sflag, size = 0x8, scoped, tag = 'scoped memory for tpu_custom_call.1']
    #allocation5 [shape = 's32[2]{0}', space=sflag, size = 0x8, scoped, tag = 'scoped memory for tpu_custom_call.1']
    #allocation6 [shape = 'u8[1024]{0}', space=vmem, size = 0x400, scoped, tag = 'output window, operand 0']
    %8 = vsyncpa [#allocation4], 0
    %s9 = scalar_lea.sflag [#allocation4], 1
    %10 = vsyncpa %s9, 0
    %11 = vsyncpa [#allocation5], 0
    %s12 = scalar_lea.sflag [#allocation5], 1
    %13 = vsyncpa %s12, 0
    loop: start=0, step=1, limit=4
    $region2: #{tpu_custom_call.1} parent=1 // loop_pre_header
      _
    $region3: #{tpu_custom_call.1} parent=1 // loop_header
      %s15 = sphi 0, %s19
      %p16 = scmp.ge.s32.totalorder %s15, 4
      %s25 = sphi 0, %s27
      %s28 = sphi 0, %s25
      %s29 = sphi 0, %s28
      %s45 = sphi 0, %s29
      %s49 = sphi 0, %s49
      %s51 = sphi 0, %s49
      %s52 = sphi 0, %s51
      %s66 = sphi 0, %s52
      %s70 = sphi 0, %s70
      %s72 = sphi 0, %s70
      %s73 = sphi 0, %s72
      %s87 = sphi 0, %s73
      %s93 = sphi 0, %s95
      %s96 = sphi 0, %s93
      %s97 = sphi 0, %s96
      %s113 = sphi 0, %s97
    $region4: #{tpu_custom_call.1} parent=1 // loop_header_branch
      %18 = sbr.rel (%p16) target = $region8
    $region5: #{tpu_custom_call.1} parent=1 // loop_body
      %s20 = ssub.s32 %s15, 1
      %s21 = ssub.s32 %s15, 2
      %s22 = sadd.s32 %s15, 1
      %s23 = ssub.s32 %s15, %s22
      %p24 = scmp.eq.s32.totalorder %s23, 0
      %s26 = sadd.s32 %s25, 1
      %s27 = scalar_select %p24, %s25, %s26
      %p30 = pneg %p24
      %p31 = scmp.eq.s32.totalorder %s15, 1
      %p32 = por %p30, %p31
      %p33 = scmp.ne.s32.totalorder %s25, %s28
      %p34 = scmp.eq.s32.totalorder %s15, 0
      %p35 = por %p33, %p34
      %p36 = scmp.ne.s32.totalorder %s25, %s28
      %p37 = scmp.eq.s32.totalorder %s20, 1
      %p38 = por %p36, %p37
      %p39 = scmp.ne.s32.totalorder %s28, %s29
      %p40 = scmp.eq.s32.totalorder %s20, 0
      %p41 = por %p39, %p40
      %p42 = scmp.ne.s32.totalorder %s28, %s29
      %p43 = scmp.eq.s32.totalorder %s21, 1
      %p44 = por %p42, %p43
      %p46 = scmp.ne.s32.totalorder %s29, %s45
      %p47 = scmp.eq.s32.totalorder %s21, 0
      %p48 = por %p46, %p47
      %s50 = sadd.s32 %s49, 1
      %p53 = scmp.eq.s32.totalorder %s15, 1
      %p54 = scmp.ne.s32.totalorder %s49, %s51
      %p55 = scmp.eq.s32.totalorder %s15, 0
      %p56 = por %p54, %p55
      %p57 = scmp.ne.s32.totalorder %s49, %s51
      %p58 = scmp.eq.s32.totalorder %s20, 1
      %p59 = por %p57, %p58
      %p60 = scmp.ne.s32.totalorder %s51, %s52
      %p61 = scmp.eq.s32.totalorder %s20, 0
      %p62 = por %p60, %p61
      %p63 = scmp.ne.s32.totalorder %s51, %s52
      %p64 = scmp.eq.s32.totalorder %s21, 1
      %p65 = por %p63, %p64
      %p67 = scmp.ne.s32.totalorder %s52, %s66
      %p68 = scmp.eq.s32.totalorder %s21, 0
      %p69 = por %p67, %p68
      %s71 = sadd.s32 %s70, 1
      %p74 = scmp.eq.s32.totalorder %s15, 1
      %p75 = scmp.ne.s32.totalorder %s70, %s72
      %p76 = scmp.eq.s32.totalorder %s15, 0
      %p77 = por %p75, %p76
      %p78 = scmp.ne.s32.totalorder %s70, %s72
      %p79 = scmp.eq.s32.totalorder %s20, 1
      %p80 = por %p78, %p79
      %p81 = scmp.ne.s32.totalorder %s72, %s73
      %p82 = scmp.eq.s32.totalorder %s20, 0
      %p83 = por %p81, %p82
      %p84 = scmp.ne.s32.totalorder %s72, %s73
      %p85 = scmp.eq.s32.totalorder %s21, 1
      %p86 = por %p84, %p85
      %p88 = scmp.ne.s32.totalorder %s73, %s87
      %p89 = scmp.eq.s32.totalorder %s21, 0
      %p90 = por %p88, %p89
      %s91 = ssub.s32 %s15, %s22
      %p92 = scmp.eq.s32.totalorder %s91, 0
      %s94 = sadd.s32 %s93, 1
      %s95 = scalar_select %p92, %s93, %s94
      %p98 = pneg %p92
      %p99 = scmp.eq.s32.totalorder %s15, 1
      %p100 = por %p98, %p99
      %p101 = scmp.ne.s32.totalorder %s93, %s96
      %p102 = scmp.eq.s32.totalorder %s15, 0
      %p103 = por %p101, %p102
      %p104 = scmp.ne.s32.totalorder %s93, %s96
      %p105 = scmp.eq.s32.totalorder %s20, 1
      %p106 = por %p104, %p105
      %p107 = scmp.ne.s32.totalorder %s96, %s97
      %p108 = scmp.eq.s32.totalorder %s20, 0
      %p109 = por %p107, %p108
      %p110 = scmp.ne.s32.totalorder %s96, %s97
      %p111 = scmp.eq.s32.totalorder %s21, 1
      %p112 = por %p110, %p111
      %p114 = scmp.ne.s32.totalorder %s97, %s113
      %p115 = scmp.eq.s32.totalorder %s21, 0
      %p116 = por %p114, %p115
      %p117 = scmp.le.s32.totalorder 1, %s15
      %p118 = scmp.lt.s32.totalorder %s15, 3
      %p119 = pnand %p117, %p118
      %p120 = pneg %p119
      // Predicated region
      $region9: #{tpu_custom_call.1} parent=5 // pred_check
        _
      $region10: #{tpu_custom_call.1} parent=5 // pred_check_branch
        %122 = sbr.rel (%p119) target = $region12
      $region11: #{tpu_custom_call.1} parent=5 // pred_region
        %s123 = ssub.s32 %s15, 1
        // Predicated region
        $region13: #{tpu_custom_call.1} parent=11 // pred_check
          %p124 = pneg %p62
        $region14: #{tpu_custom_call.1} parent=11 // pred_check_branch
          %126 = sbr.rel (%p124) target = $region16
        $region15: #{tpu_custom_call.1} parent=11 // pred_region
          _
        $region16: #{tpu_custom_call.1} parent=11 // pred_fallthru
          _
        // Predicated region
        $region17: #{tpu_custom_call.1} parent=11 // pred_check
          %p127 = pneg %p83
        $region18: #{tpu_custom_call.1} parent=11 // pred_check_branch
          %129 = sbr.rel (%p127) target = $region20
        $region19: #{tpu_custom_call.1} parent=11 // pred_region
          _
        $region20: #{tpu_custom_call.1} parent=11 // pred_fallthru
          _
      $region12: #{tpu_custom_call.1} parent=5 // pred_fallthru
        _
      %p130 = scmp.lt.s32.totalorder %s15, 2
      // Predicated region
      $region21: #{tpu_custom_call.1} parent=5 // pred_check
        %p131 = pneg %p130
      $region22: #{tpu_custom_call.1} parent=5 // pred_check_branch
        %133 = sbr.rel (%p131) target = $region24
      $region23: #{tpu_custom_call.1} parent=5 // pred_region
        // Predicated region
        $region25: #{tpu_custom_call.1} parent=23 // pred_check
          %p134 = pneg %p35
        $region26: #{tpu_custom_call.1} parent=23 // pred_check_branch
          %136 = sbr.rel (%p134) target = $region28
        $region27: #{tpu_custom_call.1} parent=23 // pred_region
          %s137 = sand.u32 %s25, 1
          %s138 = scalar_lea.sflag [#allocation4], %s137
          %s139 = sand.u32 %s25, 1
          %s140 = smul.addr %s139, 8
          %s141 = scalar_lea.vmem [#allocation3], %s140
          %s143 = ssub.s32 128, 128
          %144 = vsyncadd %s138, %s143
          %s145 = smul.addr %s15, 2
          %s146 = smul.addr %s145, 64
          %s147 = scalar_lea.hbm %s0, %s146
          %s149 = sshll.u32 %s141, 4
          %s150 = int_to_ptr.vmem [resolvable:$true] %s149
          %152 = dma.hbm_to_vmem [thread:$0]  %s147, 128, %s150, %s138
        $region28: #{tpu_custom_call.1} parent=23 // pred_fallthru
          _
      $region24: #{tpu_custom_call.1} parent=5 // pred_fallthru
        _
      %p153 = scmp.le.s32.totalorder 1, %s15
      %p154 = scmp.lt.s32.totalorder %s15, 3
      %p155 = pnand %p153, %p154
      %p156 = pneg %p155
      // Predicated region
      $region29: #{tpu_custom_call.1} parent=5 // pred_check
        _
      $region30: #{tpu_custom_call.1} parent=5 // pred_check_branch
        %158 = sbr.rel (%p155) target = $region32
      $region31: #{tpu_custom_call.1} parent=5 // pred_region
        %s159 = ssub.s32 %s15, 1
        %s160 = sand.u32 %s28, 1
        %s161 = scalar_lea.sflag [#allocation4], %s160
        %s162 = sand.u32 %s28, 1
        %s163 = smul.addr %s162, 8
        %s164 = scalar_lea.vmem [#allocation3], %s163
        // Predicated region
        $region33: #{tpu_custom_call.1} parent=31 // pred_check
          %p165 = pneg %p41
        $region34: #{tpu_custom_call.1} parent=31 // pred_check_branch
          %167 = sbr.rel (%p165) target = $region36
        $region35: #{tpu_custom_call.1} parent=31 // pred_region
          %168 = dma.done %s161, 128
        $region36: #{tpu_custom_call.1} parent=31 // pred_fallthru
          _
        %s169 = sand.u32 %s28, 1
        %s170 = scalar_lea.sflag [#allocation4], %s169
        %s171 = sand.u32 %s28, 1
        %s172 = smul.addr %s171, 8
        %s173 = scalar_lea.vmem [#allocation3], %s172
        %p174 = pneg %p41
        %p175 = pneg %p38
        %p176 = pneg %p62
        %p177 = pneg %p59
        %p178 = pneg %p83
        %p179 = pneg %p80
        %p180 = pneg %p109
        %p181 = pneg %p106
        %s182 = sand.u32 %s96, 1
        %s183 = scalar_lea.sflag [#allocation5], %s182
        %s184 = sand.u32 %s96, 1
        %s185 = scalar_lea.vmem [#allocation6], %s184
        %v186 = vld [vmem:[%s164] sm:$0xff]
        %v188 = vcombine.high %v186, %v186
        %vm190 = vcmask 1043456
        %v191 = vsel %vm190, %v186, 0.0
        %v192 = vsel %vm190, %v188, 0.0
        %v193 = vadd.f32 %v191, %v192
        %194 = vadd.xlane.f32.xlu0 %v193
        %v195 = vpop.xlane.xlu0 %194
        %v196 = vmul.f32 %v195, 0.00390625
        %v198 = vlaneseq
        %v199 = vand.u32 %v198, 127
        %v200 = vlaneseq
        %v201 = vshrl.u32 %v200, 7
        %v202 = vsub.s32 %v199, %v201
        %v203 = vrot.slane %v196, %v202
        %vm205 = vcmask 24576
        %206 = vst.msk [vmem:[#allocation2] sm:$0x1] %vm205, %v203
        %v207 = vsel %vm190, %v186, -inf
        %v208 = vsel %vm190, %v188, -inf
        %v209 = vmax.f32 %v207, %v208
        %210 = vmax.xlane.f32.xlu0 %v209
        %v211 = vpop.xlane.xlu0 %210
        %v213 = vlaneseq
        %v214 = vshrl.u32 %v213, 7
        %v215 = vsub.s32 %v199, %v214
        %v216 = vrot.slane %v211, %v215
        %218 = vst.msk [vmem:[#allocation2 + $0x1] sm:$0x1] %vm205, %v216
        %v219 = vld [vmem:[#allocation2] sm:$0x3]
        %v220 = vld [vmem:[%s1] sm:$0xff]
        %v221 = vld [vmem:[%s2] sm:$0xf]
        %vm222 = vcmask 31744
        %v224 = vsel %vm222, %v219, 0
        %v227 = vsel %vm222, %v220, 0
        %229 = vmatprep.subr.mxu0 0.0
        %230 = vmatpush1.xpose.msra.mxu0 %v227
        %231 = vmatprep.subr.mxu0 0.0
        %232 = vmatpush1.xpose.msra.mxu0 0.0
        %233 = vmatprep.subr.mxu0 0.0
        %234 = vmatpush1.xpose.msra.mxu0 0.0
        %235 = vmatprep.subr.mxu0 0.0
        %236 = vmatpush1.xpose.msra.mxu0 0.0
        %237 = vmatprep.subr.mxu0 0.0
        %238 = vmatpush1.xpose.msra.mxu0 0.0
        %239 = vmatprep.subr.mxu0 0.0
        %240 = vmatpush1.xpose.msra.mxu0 0.0
        %241 = vmatprep.subr.mxu0 0.0
        %242 = vmatpush1.xpose.msra.mxu0 0.0
        %243 = vmatprep.subr.mxu0 0.0
        %244 = vmatpush1.xpose.msra.mxu0 0.0
        %245 = vmatprep.subr.mxu0 0.0
        %246 = vmatpush1.xpose.msra.mxu0 0.0
        %247 = vmatprep.subr.mxu0 0.0
        %248 = vmatpush1.xpose.msra.mxu0 0.0
        %249 = vmatprep.subr.mxu0 0.0
        %250 = vmatpush1.xpose.msra.mxu0 0.0
        %251 = vmatprep.subr.mxu0 0.0
        %252 = vmatpush1.xpose.msra.mxu0 0.0
        %253 = vmatprep.subr.mxu0 0.0
        %254 = vmatpush1.xpose.msra.mxu0 0.0
        %255 = vmatprep.subr.mxu0 0.0
        %256 = vmatpush1.xpose.msra.mxu0 0.0
        %257 = vmatprep.subr.mxu0 0.0
        %258 = vmatpush1.xpose.msra.mxu0 0.0
        %259 = vmatprep.subr.mxu0 0.0
        %260 = vmatpush1.xpose.msra.mxu0 0.0
        %261 = vmatprep.subr.mxu0 0.0
        %262 = vmatpush1.xpose.msra.mxu0 0.0
        %263 = vmatprep.subr.mxu0 0.0
        %264 = vmatpush1.xpose.msra.mxu0 0.0
        %265 = vmatprep.subr.mxu0 0.0
        %266 = vmatpush1.xpose.msra.mxu0 0.0
        %267 = vmatprep.subr.mxu0 0.0
        %268 = vmatpush1.xpose.msra.mxu0 0.0
        %269 = vmatprep.subr.mxu0 0.0
        %270 = vmatpush1.xpose.msra.mxu0 0.0
        %271 = vmatprep.subr.mxu0 0.0
        %272 = vmatpush1.xpose.msra.mxu0 0.0
        %273 = vmatprep.subr.mxu0 0.0
        %274 = vmatpush1.xpose.msra.mxu0 0.0
        %275 = vmatprep.subr.mxu0 0.0
        %276 = vmatpush1.xpose.msra.mxu0 0.0
        %277 = vmatprep.subr.mxu0 0.0
        %278 = vmatpush1.xpose.msra.mxu0 0.0
        %279 = vmatprep.subr.mxu0 0.0
        %280 = vmatpush1.xpose.msra.mxu0 0.0
        %281 = vmatprep.subr.mxu0 0.0
        %282 = vmatpush1.xpose.msra.mxu0 0.0
        %283 = vmatprep.subr.mxu0 0.0
        %284 = vmatpush1.xpose.msra.mxu0 0.0
        %285 = vmatprep.subr.mxu0 0.0
        %286 = vmatpush1.xpose.msra.mxu0 0.0
        %287 = vmatprep.subr.mxu0 0.0
        %288 = vmatpush1.xpose.msra.mxu0 0.0
        %289 = vmatprep.subr.mxu0 0.0
        %290 = vmatpush1.xpose.msra.mxu0 0.0
        %291 = vmatprep.subr.mxu0 0.0
        %292 = vmatpush1.xpose.msra.mxu0 0.0
        %293 = vmatprep.mubr.f32.mxu0 0.0
        %294 = vmatmul.mubr.f32.gmra.mrb[0].mxu0 %v224
        %v295 = vpop.f32.mrb[0].mxu0
        %v296 = vadd.f32 0.0, %v295
        %v297 = vpop.f32.mrb[0].mxu0
        %298 = vdwg.mxu0
        %v299 = vmax.f32 %v296, 0.0
        %vm300 = vcmask 64512
        %v302 = vsel %vm300, %v299, 0
        %v305 = vsel %vm300, %v221, 0
        %307 = vmatprep.subr.mxu0 0.0
        %308 = vmatpush1.xpose.msra.mxu0 %v305
        %309 = vmatprep.subr.mxu0 0.0
        %310 = vmatpush1.xpose.msra.mxu0 0.0
        %311 = vmatprep.subr.mxu0 0.0
        %312 = vmatpush1.xpose.msra.mxu0 0.0
        %313 = vmatprep.subr.mxu0 0.0
        %314 = vmatpush1.xpose.msra.mxu0 0.0
        %315 = vmatprep.subr.mxu0 0.0
        %316 = vmatpush1.xpose.msra.mxu0 0.0
        %317 = vmatprep.subr.mxu0 0.0
        %318 = vmatpush1.xpose.msra.mxu0 0.0
        %319 = vmatprep.subr.mxu0 0.0
        %320 = vmatpush1.xpose.msra.mxu0 0.0
        %321 = vmatprep.subr.mxu0 0.0
        %322 = vmatpush1.xpose.msra.mxu0 0.0
        %323 = vmatprep.subr.mxu0 0.0
        %324 = vmatpush1.xpose.msra.mxu0 0.0
        %325 = vmatprep.subr.mxu0 0.0
        %326 = vmatpush1.xpose.msra.mxu0 0.0
        %327 = vmatprep.subr.mxu0 0.0
        %328 = vmatpush1.xpose.msra.mxu0 0.0
        %329 = vmatprep.subr.mxu0 0.0
        %330 = vmatpush1.xpose.msra.mxu0 0.0
        %331 = vmatprep.subr.mxu0 0.0
        %332 = vmatpush1.xpose.msra.mxu0 0.0
        %333 = vmatprep.subr.mxu0 0.0
        %334 = vmatpush1.xpose.msra.mxu0 0.0
        %335 = vmatprep.subr.mxu0 0.0
        %336 = vmatpush1.xpose.msra.mxu0 0.0
        %337 = vmatprep.subr.mxu0 0.0
        %338 = vmatpush1.xpose.msra.mxu0 0.0
        %339 = vmatprep.subr.mxu0 0.0
        %340 = vmatpush1.xpose.msra.mxu0 0.0
        %341 = vmatprep.subr.mxu0 0.0
        %342 = vmatpush1.xpose.msra.mxu0 0.0
        %343 = vmatprep.subr.mxu0 0.0
        %344 = vmatpush1.xpose.msra.mxu0 0.0
        %345 = vmatprep.subr.mxu0 0.0
        %346 = vmatpush1.xpose.msra.mxu0 0.0
        %347 = vmatprep.subr.mxu0 0.0
        %348 = vmatpush1.xpose.msra.mxu0 0.0
        %349 = vmatprep.subr.mxu0 0.0
        %350 = vmatpush1.xpose.msra.mxu0 0.0
        %351 = vmatprep.subr.mxu0 0.0
        %352 = vmatpush1.xpose.msra.mxu0 0.0
        %353 = vmatprep.subr.mxu0 0.0
        %354 = vmatpush1.xpose.msra.mxu0 0.0
        %355 = vmatprep.subr.mxu0 0.0
        %356 = vmatpush1.xpose.msra.mxu0 0.0
        %357 = vmatprep.subr.mxu0 0.0
        %358 = vmatpush1.xpose.msra.mxu0 0.0
        %359 = vmatprep.subr.mxu0 0.0
        %360 = vmatpush1.xpose.msra.mxu0 0.0
        %361 = vmatprep.subr.mxu0 0.0
        %362 = vmatpush1.xpose.msra.mxu0 0.0
        %363 = vmatprep.subr.mxu0 0.0
        %364 = vmatpush1.xpose.msra.mxu0 0.0
        %365 = vmatprep.subr.mxu0 0.0
        %366 = vmatpush1.xpose.msra.mxu0 0.0
        %367 = vmatprep.subr.mxu0 0.0
        %368 = vmatpush1.xpose.msra.mxu0 0.0
        %369 = vmatprep.subr.mxu0 0.0
        %370 = vmatpush1.xpose.msra.mxu0 0.0
        %371 = vmatprep.mubr.f32.mxu0 0.0
        %372 = vmatmul.mubr.f32.gmra.mrb[0].mxu0 %v302
        %v373 = vpop.f32.mrb[0].mxu0
        %v374 = vadd.f32 0.0, %v373
        %v375 = vpop.f32.mrb[0].mxu0
        %376 = vdwg.mxu0
        %v378 = vrot.slane %v374, 1
        %v380 = vadd.f32 %v374, %v378
        %v381 = vxor.u32 %v380, 2147483648
        %v382 = vmul.f32 %v381, 1.442695
        %v383 = vpow.pop %v382
        %v384 = vadd.f32 %v383, 1.0
        %v385 = vrcp.pop %v384
        %v386 = vmul.f32 1.0, %v385
        %387 = vst.msk [vmem:[%s185] sm:$0x1] %vm205, %v386
        %s388 = sand.u32 %s96, 1
        %s389 = scalar_lea.sflag [#allocation5], %s388
        %s390 = sand.u32 %s96, 1
        %s391 = scalar_lea.vmem [#allocation6], %s390
        // Predicated region
        $region37: #{tpu_custom_call.1} parent=31 // pred_check
          %p392 = pneg %p106
        $region38: #{tpu_custom_call.1} parent=31 // pred_check_branch
          %394 = sbr.rel (%p392) target = $region40
        $region39: #{tpu_custom_call.1} parent=31 // pred_region
          %s396 = ssub.s32 16, 16
          %397 = vsyncadd %s389, %s396
          %s398 = smul.addr %s20, 16
          %s399 = scalar_lea.hbm %s3, %s398
          %s401 = sshll.u32 %s391, 4
          %s402 = int_to_ptr.vmem [resolvable:$true] %s401
          %404 = dma.vmem_to_hbm [thread:$0]  %s402, 16, %s399, %s389
        $region40: #{tpu_custom_call.1} parent=31 // pred_fallthru
          _
      $region32: #{tpu_custom_call.1} parent=5 // pred_fallthru
        _
      %p405 = scmp.le.s32.totalorder 2, %s15
      // Predicated region
      $region41: #{tpu_custom_call.1} parent=5 // pred_check
        %p406 = pneg %p405
      $region42: #{tpu_custom_call.1} parent=5 // pred_check_branch
        %408 = sbr.rel (%p406) target = $region44
      $region43: #{tpu_custom_call.1} parent=5 // pred_region
        %s409 = ssub.s32 %s15, 2
        // Predicated region
        $region45: #{tpu_custom_call.1} parent=43 // pred_check
          %p410 = pneg %p112
        $region46: #{tpu_custom_call.1} parent=43 // pred_check_branch
          %412 = sbr.rel (%p410) target = $region48
        $region47: #{tpu_custom_call.1} parent=43 // pred_region
          %s413 = sand.u32 %s97, 1
          %s414 = scalar_lea.sflag [#allocation5], %s413
          %s415 = sand.u32 %s97, 1
          %s416 = scalar_lea.vmem [#allocation6], %s415
          %417 = dma.done %s414, 16
        $region48: #{tpu_custom_call.1} parent=43 // pred_fallthru
          _
      $region44: #{tpu_custom_call.1} parent=5 // pred_fallthru
        _
    $region6: #{tpu_custom_call.1} parent=1 // loop_footer
      %s19 = sadd.s32 1, %s15
    $region7: #{tpu_custom_call.1} parent=1 // loop_footer_branch
      %14 = sbr.rel target = $region3
    $region8: #{tpu_custom_call.1} parent=1 // loop_exit
      _
    %418 = vsyncpa [#allocation4], 1
    %s419 = scalar_lea.sflag [#allocation4], 1
    %420 = vsyncpa %s419, 1
    %421 = vsyncpa [#allocation5], 1
    %s422 = scalar_lea.sflag [#allocation5], 1
    %423 = vsyncpa %s422, 1

</llo_original>
